<compile_context>
chip_gen: v7x
topology: tpu7x:2x2x1
jax: 0.10.0
libtpu: 0.0.40
codegen_flags: <defaults>
</compile_context>

<pallas_src>
import functools

import jax
import jax.numpy as jnp
from jax.experimental import pallas as pl
from jax.experimental.pallas import tpu as pltpu


# ----------------------------------------------------------------------------
# DynamicPosBiasV2 (small MLP: Linear(1,d) -> 3x [LayerNorm, ReLU, Linear]).
# Deterministic synthetic parameters; glue, not the hot path.
# ----------------------------------------------------------------------------
def init_dpb_params(key, d, h):
    ks = jax.random.split(key, 4)

    def lin(k, fan_in, fan_out):
        w = jax.random.normal(k, (fan_in, fan_out), jnp.float32) * 0.02
        b = jnp.zeros((fan_out,), jnp.float32)
        return {"w": w, "b": b}

    def block(k, fan_in, fan_out):
        p = lin(k, fan_in, fan_out)
        p["ln_g"] = jnp.ones((fan_in,), jnp.float32)
        p["ln_b"] = jnp.zeros((fan_in,), jnp.float32)
        return p

    return {
        "proj": lin(ks[0], 1, d),
        "pos1": block(ks[1], d, d),
        "pos2": block(ks[2], d, d),
        "pos3": block(ks[3], d, h),
    }


def _layer_norm(x, g, b, eps=1e-5):
    mu = jnp.mean(x, axis=-1, keepdims=True)
    var = jnp.mean((x - mu) ** 2, axis=-1, keepdims=True)
    return (x - mu) * jax.lax.rsqrt(var + eps) * g + b


def dpb_forward(params, biases, residual=False):
    # biases: (m, 1) -> (m, h)
    def blk(x, p):
        y = _layer_norm(x, p["ln_g"], p["ln_b"])
        y = jax.nn.relu(y)
        return y @ p["w"] + p["b"]

    x = biases @ params["proj"]["w"] + params["proj"]["b"]
    if residual:
        x = x + blk(x, params["pos1"])
        x = x + blk(x, params["pos2"])
        x = blk(x, params["pos3"])
    else:
        x = blk(blk(blk(x, params["pos1"]), params["pos2"]), params["pos3"])
    return x


# ----------------------------------------------------------------------------
# Build the (H, 2n) kernel vector `a` exactly as the PyTorch forward does.
# ----------------------------------------------------------------------------
def build_kernel_vector(dpb_params, n, h, n_max, *, causal=False, use_exp=False,
                        use_neg_exp=False, use_decay=False, use_multi_decay=False,
                        use_pad=False, residual=False, gamma=None):
    zero_value = -jnp.inf if use_exp else 0.0
    dpb = functools.partial(dpb_forward, dpb_params, residual=residual)

    zero = dpb(jnp.zeros((1, 1), jnp.float32)).T  # (h, 1)

    if use_pad:
        l1 = min(n - 1, n_max - 1)
        l2 = max(0, n - 1 - l1)
        pos_dpb = dpb(jnp.arange(1, l1 + 1, dtype=jnp.float32).reshape(-1, 1)).T
        if causal:
            neg_dpb = jnp.full((l1, h), zero_value, jnp.float32).T
        else:
            neg_in = -jnp.arange(1, l1 + 1, dtype=jnp.float32)[::-1].reshape(-1, 1)
            neg_dpb = dpb(neg_in).T
        pos = jnp.concatenate(
            [pos_dpb, jnp.full((h, l2), zero_value, jnp.float32)], axis=-1)
        neg = jnp.concatenate(
            [jnp.full((h, l2), zero_value, jnp.float32), neg_dpb], axis=-1)
    else:
        pos = dpb(jnp.arange(1, n, dtype=jnp.float32).reshape(-1, 1)).T  # (h, n-1)
        if causal:
            neg = jnp.full((n - 1, h), zero_value, jnp.float32).T
        else:
            neg_in = -jnp.arange(1, n, dtype=jnp.float32)[::-1].reshape(-1, 1)
            neg = dpb(neg_in).T  # (h, n-1)

    if use_exp and use_neg_exp:
        zero = -jnp.exp(zero)
        pos = -jnp.exp(pos)
        if not causal:
            neg = -jnp.exp(neg)

    if use_decay or use_multi_decay:
        coef = jnp.arange(1, n, dtype=jnp.float32).reshape(1, -1)
        if use_exp:
            g = jnp.log(jax.nn.sigmoid(gamma)) * coef
            pos = g + pos
            neg = jnp.flip(g, axis=1) + neg
        else:
            g = jax.nn.sigmoid(gamma) ** coef
            pos = g * pos
            neg = jnp.flip(g, axis=1) * neg

    if use_exp:
        a = jnp.exp(jnp.clip(jnp.concatenate([zero, pos, zero, neg], axis=-1),
                             -60.0, 30.0))
    else:
        a = jnp.concatenate([zero, pos, zero, neg], axis=-1)
    return a  # (h, 2n)


# ----------------------------------------------------------------------------
# Single-pass padded Toeplitz materialization in the compute dtype.
#   T[h, i, j] = a[h, (i - j) mod 2n] for i, j < n ; zero in the padded region.
# ----------------------------------------------------------------------------
def _build_toeplitz_padded(a, n, n_pad, dtype):
    H = a.shape[0]
    a_ext = jnp.concatenate(
        [a.astype(dtype), jnp.zeros((H, 1), dtype)], axis=-1)      # (H, 2n + 1)
    ii = jnp.arange(n_pad)[:, None]
    jj = jnp.arange(n_pad)[None, :]
    idx = jnp.where((ii < n) & (jj < n), (ii - jj) % (2 * n), 2 * n)
    return a_ext[:, idx]                                           # (H, n_pad, n_pad)


# ----------------------------------------------------------------------------
# VMEM-aware tile planning.
# ----------------------------------------------------------------------------
def _round_up(x, m):
    return ((x + m - 1) // m) * m


def _vmem_capacity_bytes():
    try:
        return int(pltpu.get_tpu_info().vmem_capacity_bytes)
    except Exception:
        return 64 * 1024 * 1024   # conservative: v7x per-TensorCore VMEM


def _plan_tiles(H, N, BE, compute_dtype, out_dtype, vmem_capacity):
    Np = _round_up(N, 128)      # lane-aligned rows & contraction dim
    BEp = _round_up(BE, 128)    # lane-dense output width (unmasked vst)
    cs = jnp.dtype(compute_dtype).itemsize
    os = jnp.dtype(out_dtype).itemsize
    budget = int(vmem_capacity * 0.6)   # headroom for Pallas internals

    def _divs(total, cands):
        return [c for c in cands if c <= total and total % c == 0]

    tl_cands = _divs(BEp, (1024, 512, 256, 128))
    if BEp <= 1024 and BEp not in tl_cands:
        tl_cands.insert(0, BEp)          # prefer L_tiles == 1 (x read once)
    tm_cands = _divs(Np, (512, 256, 128))
    if Np <= 512 and Np not in tm_cands:
        tm_cands.insert(0, Np)

    plan = None
    # Preferred: full contraction (no K axis / accumulator), biggest tiles.
    for tl in tl_cands:
        for tm in tm_cands:
            fp1 = 2 * (tm * Np + Np * tl) * cs + 2 * tm * tl * os
            if fp1 <= budget:
                hb = 1
                if Np // tm == 1 and BEp // tl == 1:
                    # Whole per-head problem is one tile: block heads to
                    # amortize the ~0.35 us per-grid-step overhead.
                    for cand in (8, 4, 2):
                        if H % cand == 0 and cand * fp1 <= budget:
                            hb = cand
                            break
                plan = dict(mode="fullk", hb=hb, tm=tm, tk=Np, tl=tl,
                            footprint=hb * fp1)
                break
        if plan is not None:
            break

    if plan is None:
        # Very large N: K-tiled reduction with an f32 VMEM accumulator.
        for tl in tl_cands:
            for tm in tm_cands:
                for tk in _divs(Np, (512, 256, 128)):
                    fp = (2 * (tm * tk + tk * tl) * cs + 2 * tm * tl * os
                          + tm * tl * 4)
                    if fp <= budget:
                        plan = dict(mode="ktiled", hb=1, tm=tm, tk=tk, tl=tl,
                                    footprint=fp)
                        break
                if plan is not None:
                    break
            if plan is not None:
                break

    if plan is None:
        plan = dict(mode="ktiled", hb=1, tm=128, tk=128, tl=128,
                    footprint=(2 * (128 * 128 + 128 * 128) * cs
                               + 2 * 128 * 128 * os + 128 * 128 * 4))

    plan["Np"] = Np
    plan["BEp"] = BEp
    plan["vmem_limit"] = int(max(32 * 1024 * 1024,
                                 min(int(vmem_capacity * 0.9),
                                     plan["footprint"] + 16 * 1024 * 1024)))
    return plan


# ----------------------------------------------------------------------------
# Pallas kernels: per-head(-block) Toeplitz matmul  out[h] = T[h] @ x[h]
# ----------------------------------------------------------------------------
def _toeplitz_fullk_kernel(t_ref, x_ref, o_ref):
    # Full contraction per step: no accumulator scratch, no init/finalize.
    for i in range(t_ref.shape[0]):          # static unroll over the head block
        o_ref[i] = jnp.dot(
            t_ref[i], x_ref[i], preferred_element_type=jnp.float32
        ).astype(o_ref.dtype)


def _toeplitz_ktiled_kernel(t_ref, x_ref, o_ref, acc_ref):
    # Fallback for very large N: K-tiled reduction with f32 VMEM accumulator.
    @pl.when(pl.program_id(3) == 0)
    def _init():
        acc_ref[...] = jnp.zeros_like(acc_ref)

    for i in range(t_ref.shape[0]):
        acc_ref[i] = acc_ref[i] + jnp.dot(
            t_ref[i], x_ref[i], preferred_element_type=jnp.float32)

    @pl.when(pl.program_id(3) == pl.num_programs(3) - 1)
    def _store():
        o_ref[...] = acc_ref[...].astype(o_ref.dtype)


def toeplitz_apply(T, xf, plan, out_dtype):
    H, Np, _ = T.shape
    BEp = xf.shape[-1]
    hb, tm, tk, tl = plan["hb"], plan["tm"], plan["tk"], plan["tl"]
    nh, nm, nl = H // hb, Np // tm, BEp // tl
    cs = T.dtype.itemsize
    os = jnp.dtype(out_dtype).itemsize
    flops = 2 * H * Np * Np * BEp

    if plan["mode"] == "fullk":
        grid = (nh, nm, nl)
        in_specs = [
            # T tile: index ignores l (innermost) -> fetched once per (h, m).
            pl.BlockSpec((hb, tm, Np), lambda hh, m, l: (hh, m, 0)),
            # x tile: full-K block; index ignores m -> when nl == 1 it is
            # fetched once per head-block and re-used across all row tiles.
            pl.BlockSpec((hb, Np, tl), lambda hh, m, l: (hh, 0, l)),
        ]
        out_specs = pl.BlockSpec((hb, tm, tl), lambda hh, m, l: (hh, m, l))
        scratch = ()
        kernel = _toeplitz_fullk_kernel
        sem = ("parallel", "parallel", "parallel")
        t_passes, x_passes = 1, (1 if nl == 1 else nm)
    else:
        nk = Np // tk
        grid = (nh, nm, nl, nk)
        in_specs = [
            pl.BlockSpec((hb, tm, tk), lambda hh, m, l, k: (hh, m, k)),
            pl.BlockSpec((hb, tk, tl), lambda hh, m, l, k: (hh, k, l)),
        ]
        out_specs = pl.BlockSpec((hb, tm, tl), lambda hh, m, l, k: (hh, m, l))
        scratch = (pltpu.VMEM((hb, tm, tl), jnp.float32),)
        kernel = _toeplitz_ktiled_kernel
        sem = ("parallel", "parallel", "parallel", "arbitrary")
        t_passes, x_passes = nl, nm

    bytes_accessed = int(t_passes * H * Np * Np * cs
                         + x_passes * H * Np * BEp * cs
                         + H * Np * BEp * os)

    return pl.pallas_call(
        kernel,
        out_shape=jax.ShapeDtypeStruct((H, Np, BEp), out_dtype),
        grid_spec=pltpu.PrefetchScalarGridSpec(
            num_scalar_prefetch=0,
            grid=grid,
            in_specs=in_specs,
            out_specs=out_specs,
            scratch_shapes=scratch,
        ),
        compiler_params=pltpu.CompilerParams(
            dimension_semantics=sem,
            vmem_limit_bytes=plan["vmem_limit"]),
        cost_estimate=pl.CostEstimate(
            flops=int(flops), transcendentals=0, bytes_accessed=bytes_accessed),
    )(T, xf)


# ----------------------------------------------------------------------------
# Row sums of the Toeplitz operator directly from `a` (O(H*N)), written as two
# one-sided cumulative sums (no large-value cancellation):
#   denorm[h, i] = sum_{d=0..i} a[h, d] + sum_{e=n+i+1..2n-1} a[h, e]
# ----------------------------------------------------------------------------
def _toeplitz_row_sums(a, n):
    H = a.shape[0]
    head = jnp.cumsum(a[:, :n], axis=-1)                              # (H, n)
    neg = a[:, n + 1:2 * n]                                           # (H, n-1)
    tail_part = jnp.flip(jnp.cumsum(jnp.flip(neg, -1), axis=-1), -1)  # suffix sums
    tail = jnp.concatenate([tail_part, jnp.zeros((H, 1), a.dtype)], axis=-1)
    return head + tail                                                # (H, n)


# ----------------------------------------------------------------------------
# Full forward (dim=-2, as in the module's default call).
# ----------------------------------------------------------------------------
def dynamic_toeplitz_multihead_v2_forward(dpb_params, x, *, h, n_max,
                                          causal=False, use_exp=False,
                                          use_neg_exp=False, use_decay=False,
                                          use_multi_decay=False, use_pad=False,
                                          residual=False, gamma=None,
                                          normalize=False,
                                          compute_dtype=jnp.bfloat16):
    B, H, N, E = x.shape
    assert H == h
    # exp-path dynamic range (up to e^30) is too wide for bf16 operands.
    if use_exp and jnp.dtype(compute_dtype).itemsize < 4:
        compute_dtype = jnp.float32

    a = build_kernel_vector(dpb_params, N, h, n_max, causal=causal,
                            use_exp=use_exp, use_neg_exp=use_neg_exp,
                            use_decay=use_decay, use_multi_decay=use_multi_decay,
                            use_pad=use_pad, residual=residual, gamma=gamma)

    BE = B * E
    plan = _plan_tiles(H, N, BE, compute_dtype, x.dtype, _vmem_capacity_bytes())
    Np, BEp = plan["Np"], plan["BEp"]

    # One HBM pass to write the padded compute-dtype Toeplitz operator.
    T_p = _build_toeplitz_padded(a, N, Np, compute_dtype)

    # Collapse batch into the lane dimension: (B,H,N,E) -> (H, N, B*E).
    xf = jnp.transpose(x, (1, 2, 0, 3)).reshape(H, N, BE)
    xf_p = jnp.pad(xf.astype(compute_dtype),
                   ((0, 0), (0, Np - N), (0, BEp - BE)))

    out_p = toeplitz_apply(T_p, xf_p, plan, out_dtype=x.dtype)

    out = out_p[:, :N, :BE].reshape(H, N, B, E)
    out = jnp.transpose(out, (2, 0, 1, 3))  # (B, H, N, E)

    if normalize:
        # Equivalent to PyTorch's compute(ones, a): row sums of T, but O(H*N).
        # (Kept without an epsilon guard for strict parity with the module:
        #  non-exp / causal configs can divide by ~0 for early rows.)
        denorm = _toeplitz_row_sums(a, N)                     # (H, N) float32
        out = out / denorm[None, :, :, None].astype(out.dtype)

    return out, a


# ----------------------------------------------------------------------------
# Reference: the literal PyTorch semantics (FFT circular conv), in plain JAX.
# ----------------------------------------------------------------------------
def reference_fft_compute(x, a, n):
    y = jnp.fft.rfft(x, 2 * n, axis=-2)
    v = jnp.fft.rfft(a, axis=-1)[None, :, :, None]
    u = v * y
    return jnp.fft.irfft(u, 2 * n, axis=-2)[:, :, :n, :]


if __name__ == "__main__":
    # Module config: h heads, max length n_max, dpb hidden dim d, default flags.
    h, n_max, d = 4, 32, 16
    B, N, E = 2, 16, 32

    key = jax.random.PRNGKey(0)
    k_x, k_p, k_x2 = jax.random.split(key, 3)
    x = jax.random.normal(k_x, (B, h, N, E), jnp.float32)
    dpb_params = init_dpb_params(k_p, d, h)

    # --- 1) f32 compute path: exact semantics vs the FFT-based PyTorch ref.
    out_f32, a = dynamic_toeplitz_multihead_v2_forward(
        dpb_params, x, h=h, n_max=n_max, compute_dtype=jnp.float32)
    out_f32 = jax.block_until_ready(out_f32)
    ref = jax.block_until_ready(reference_fft_compute(x, a, N))
    assert out_f32.shape == (B, h, N, E)
    assert bool(jnp.allclose(out_f32, ref, atol=2e-3, rtol=2e-3)), \
        "f32 kernel mismatch vs FFT ref"

    # --- 2) bf16 compute path (default / fast): looser tolerance, f32 accum.
    out_bf16, _ = dynamic_toeplitz_multihead_v2_forward(
        dpb_params, x, h=h, n_max=n_max, compute_dtype=jnp.bfloat16)
    out_bf16 = jax.block_until_ready(out_bf16)
    assert bool(jnp.allclose(out_bf16, ref, atol=3e-2, rtol=3e-2)), \
        "bf16 kernel mismatch vs FFT ref"

    # --- 3) use_exp + normalize path (auto-promoted to f32 compute).
    out_exp, a_exp = dynamic_toeplitz_multihead_v2_forward(
        dpb_params, x, h=h, n_max=n_max, use_exp=True, normalize=True,
        compute_dtype=jnp.bfloat16)
    out_exp = jax.block_until_ready(out_exp)
    ref_num = reference_fft_compute(x, a_exp, N)
    ones = jnp.ones(x.shape[:-1] + (1,), x.dtype)
    ref_den = reference_fft_compute(ones, a_exp, N)
    ref_exp = ref_num / ref_den
    assert bool(jnp.allclose(out_exp, ref_exp, atol=5e-3, rtol=5e-3)), \
        "use_exp + normalize kernel mismatch vs FFT ref"

    # --- 4) normalize-path denominator check (O(H*N) cumsums vs full row sums).
    idx = (jnp.arange(N)[:, None] - jnp.arange(N)[None, :]) % (2 * N)
    T_full = a[:, idx]
    assert bool(jnp.allclose(_toeplitz_row_sums(a, N),
                             jnp.sum(T_full, axis=-1), atol=1e-4, rtol=1e-4)), \
        "row-sum denorm mismatch"

    # --- 5) medium sequence: exercises M-tiling and x re-use across row tiles.
    B2, N2, E2 = 1, 600, 64
    x2 = jax.random.normal(k_x2, (B2, h, N2, E2), jnp.float32)
    out2, a2 = dynamic_toeplitz_multihead_v2_forward(
        dpb_params, x2, h=h, n_max=n_max, compute_dtype=jnp.float32)
    out2 = jax.block_until_ready(out2)
    ref2 = jax.block_until_ready(reference_fft_compute(x2, a2, N2))
    assert out2.shape == (B2, h, N2, E2)
    assert bool(jnp.allclose(out2, ref2, atol=2e-2, rtol=2e-2)), \
        "medium-N kernel mismatch vs FFT ref"

    print("KERNEL_OK")
</pallas_src>

<mosaic_0001>
module attributes {stable_mosaic.version = 11 : i64} {
  func.func @_toeplitz_fullk_kernel(%arg0: i32, %arg1: i32, %arg2: i32, %arg3: memref<4x128x128xf32, #tpu.memory_space<vmem>>, %arg4: memref<4x128x128xf32, #tpu.memory_space<vmem>>, %arg5: memref<4x128x128xf32, #tpu.memory_space<vmem>>) attributes {dimension_semantics = [#tpu.dimension_semantics<parallel>, #tpu.dimension_semantics<parallel>, #tpu.dimension_semantics<parallel>], iteration_bounds = array<i64: 1, 1, 1>, scalar_prefetch = 0 : i64, scratch_operands = 0 : i64, tpu.core_type = #tpu.core_type<tc>, window_params = [{transform_indices = @transform_0, window_bounds = array<i64: 4, 128, 128>}, {transform_indices = @transform_1, window_bounds = array<i64: 4, 128, 128>}, {transform_indices = @transform_2, window_bounds = array<i64: 4, 128, 128>}]} {
    %c0 = arith.constant 0 : index
    %c0_0 = arith.constant 0 : index
    %c0_1 = arith.constant 0 : index
    %0 = vector.load %arg3[%c0, %c0_0, %c0_1] : memref<4x128x128xf32, #tpu.memory_space<vmem>>, vector<1x128x128xf32>
    %1 = vector.shape_cast %0 : vector<1x128x128xf32> to vector<128x128xf32>
    %c0_2 = arith.constant 0 : index
    %c0_3 = arith.constant 0 : index
    %c0_4 = arith.constant 0 : index
    %2 = vector.load %arg4[%c0_2, %c0_3, %c0_4] : memref<4x128x128xf32, #tpu.memory_space<vmem>>, vector<1x128x128xf32>
    %3 = vector.shape_cast %2 : vector<1x128x128xf32> to vector<128x128xf32>
    %cst = arith.constant dense<0.000000e+00> : vector<128x128xf32>
    %4 = tpu.matmul %1, %3, %cst {dimension_numbers = #tpu.dot_dimension_numbers<[1], [0], [0], [1], [0, 0, 1, 1], [], []>} : vector<128x128xf32>, vector<128x128xf32>, vector<128x128xf32> -> vector<128x128xf32>
    %c0_5 = arith.constant 0 : index
    %c0_6 = arith.constant 0 : index
    %c0_7 = arith.constant 0 : index
    %5 = vector.load %arg5[%c0_5, %c0_6, %c0_7] : memref<4x128x128xf32, #tpu.memory_space<vmem>>, vector<1x128x128xf32>
    %6 = vector.shape_cast %5 : vector<1x128x128xf32> to vector<128x128xf32>
    %7 = vector.shape_cast %4 : vector<128x128xf32> to vector<1x128x128xf32>
    tpu.vector_store %arg5[%c0_5, %c0_6, %c0_7], %7 {strides = array<i32>} : memref<4x128x128xf32, #tpu.memory_space<vmem>>, vector<1x128x128xf32>,
    %c1 = arith.constant 1 : index
    %c0_8 = arith.constant 0 : index
    %c0_9 = arith.constant 0 : index
    %8 = vector.load %arg3[%c1, %c0_8, %c0_9] : memref<4x128x128xf32, #tpu.memory_space<vmem>>, vector<1x128x128xf32>
    %9 = vector.shape_cast %8 : vector<1x128x128xf32> to vector<128x128xf32>
    %c1_10 = arith.constant 1 : index
    %c0_11 = arith.constant 0 : index
    %c0_12 = arith.constant 0 : index
    %10 = vector.load %arg4[%c1_10, %c0_11, %c0_12] : memref<4x128x128xf32, #tpu.memory_space<vmem>>, vector<1x128x128xf32>
    %11 = vector.shape_cast %10 : vector<1x128x128xf32> to vector<128x128xf32>
    %cst_13 = arith.constant dense<0.000000e+00> : vector<128x128xf32>
    %12 = tpu.matmul %9, %11, %cst_13 {dimension_numbers = #tpu.dot_dimension_numbers<[1], [0], [0], [1], [0, 0, 1, 1], [], []>} : vector<128x128xf32>, vector<128x128xf32>, vector<128x128xf32> -> vector<128x128xf32>
    %c1_14 = arith.constant 1 : index
    %c0_15 = arith.constant 0 : index
    %c0_16 = arith.constant 0 : index
    %13 = vector.load %arg5[%c1_14, %c0_15, %c0_16] : memref<4x128x128xf32, #tpu.memory_space<vmem>>, vector<1x128x128xf32>
    %14 = vector.shape_cast %13 : vector<1x128x128xf32> to vector<128x128xf32>
    %15 = vector.shape_cast %12 : vector<128x128xf32> to vector<1x128x128xf32>
    tpu.vector_store %arg5[%c1_14, %c0_15, %c0_16], %15 {strides = array<i32>} : memref<4x128x128xf32, #tpu.memory_space<vmem>>, vector<1x128x128xf32>,
    %c2 = arith.constant 2 : index
    %c0_17 = arith.constant 0 : index
    %c0_18 = arith.constant 0 : index
    %16 = vector.load %arg3[%c2, %c0_17, %c0_18] : memref<4x128x128xf32, #tpu.memory_space<vmem>>, vector<1x128x128xf32>
    %17 = vector.shape_cast %16 : vector<1x128x128xf32> to vector<128x128xf32>
    %c2_19 = arith.constant 2 : index
    %c0_20 = arith.constant 0 : index
    %c0_21 = arith.constant 0 : index
    %18 = vector.load %arg4[%c2_19, %c0_20, %c0_21] : memref<4x128x128xf32, #tpu.memory_space<vmem>>, vector<1x128x128xf32>
    %19 = vector.shape_cast %18 : vector<1x128x128xf32> to vector<128x128xf32>
    %cst_22 = arith.constant dense<0.000000e+00> : vector<128x128xf32>
    %20 = tpu.matmul %17, %19, %cst_22 {dimension_numbers = #tpu.dot_dimension_numbers<[1], [0], [0], [1], [0, 0, 1, 1], [], []>} : vector<128x128xf32>, vector<128x128xf32>, vector<128x128xf32> -> vector<128x128xf32>
    %c2_23 = arith.constant 2 : index
    %c0_24 = arith.constant 0 : index
    %c0_25 = arith.constant 0 : index
    %21 = vector.load %arg5[%c2_23, %c0_24, %c0_25] : memref<4x128x128xf32, #tpu.memory_space<vmem>>, vector<1x128x128xf32>
    %22 = vector.shape_cast %21 : vector<1x128x128xf32> to vector<128x128xf32>
    %23 = vector.shape_cast %20 : vector<128x128xf32> to vector<1x128x128xf32>
    tpu.vector_store %arg5[%c2_23, %c0_24, %c0_25], %23 {strides = array<i32>} : memref<4x128x128xf32, #tpu.memory_space<vmem>>, vector<1x128x128xf32>,
    %c3 = arith.constant 3 : index
    %c0_26 = arith.constant 0 : index
    %c0_27 = arith.constant 0 : index
    %24 = vector.load %arg3[%c3, %c0_26, %c0_27] : memref<4x128x128xf32, #tpu.memory_space<vmem>>, vector<1x128x128xf32>
    %25 = vector.shape_cast %24 : vector<1x128x128xf32> to vector<128x128xf32>
    %c3_28 = arith.constant 3 : index
    %c0_29 = arith.constant 0 : index
    %c0_30 = arith.constant 0 : index
    %26 = vector.load %arg4[%c3_28, %c0_29, %c0_30] : memref<4x128x128xf32, #tpu.memory_space<vmem>>, vector<1x128x128xf32>
    %27 = vector.shape_cast %26 : vector<1x128x128xf32> to vector<128x128xf32>
    %cst_31 = arith.constant dense<0.000000e+00> : vector<128x128xf32>
    %28 = tpu.matmul %25, %27, %cst_31 {dimension_numbers = #tpu.dot_dimension_numbers<[1], [0], [0], [1], [0, 0, 1, 1], [], []>} : vector<128x128xf32>, vector<128x128xf32>, vector<128x128xf32> -> vector<128x128xf32>
    %c3_32 = arith.constant 3 : index
    %c0_33 = arith.constant 0 : index
    %c0_34 = arith.constant 0 : index
    %29 = vector.load %arg5[%c3_32, %c0_33, %c0_34] : memref<4x128x128xf32, #tpu.memory_space<vmem>>, vector<1x128x128xf32>
    %30 = vector.shape_cast %29 : vector<1x128x128xf32> to vector<128x128xf32>
    %31 = vector.shape_cast %28 : vector<128x128xf32> to vector<1x128x128xf32>
    tpu.vector_store %arg5[%c3_32, %c0_33, %c0_34], %31 {strides = array<i32>} : memref<4x128x128xf32, #tpu.memory_space<vmem>>, vector<1x128x128xf32>,
    return
  }
  func.func @transform_0(%arg0: i32, %arg1: i32, %arg2: i32) -> (i32, i32, i32) {
    %c0_i32 = arith.constant 0 : i32
    %c0_i32_0 = arith.constant 0 : i32
    return %arg0, %arg1, %c0_i32 : i32, i32, i32
  }
  func.func @transform_1(%arg0: i32, %arg1: i32, %arg2: i32) -> (i32, i32, i32) {
    %c0_i32 = arith.constant 0 : i32
    %c0_i32_0 = arith.constant 0 : i32
    return %arg0, %c0_i32, %arg2 : i32, i32, i32
  }
  func.func @transform_2(%arg0: i32, %arg1: i32, %arg2: i32) -> (i32, i32, i32) {
    %c0_i32 = arith.constant 0 : i32
    return %arg0, %arg1, %arg2 : i32, i32, i32
  }
}

</mosaic_0001>

<llo_original>
// kernel: tpu_custom_call.1
$region0: #{tpu_custom_call.1}
  #allocation0 [shape = 'u32[]', space=smem, size = 0x4, offset = 0x4, fixed_abs, tag = 'smem constant byte address 0x4 - core index']
  #allocation1 [shape = 'u32[144,128]{1,0:T(1,128)}', space=vmem, size = 0x12000, scoped, tag = 'internal scratch']
  %s0 = inlined_call_operand.hbm [shape: f32[4,128,128], index: 0, kind: input, shape index: {}]
  %s1 = inlined_call_operand.hbm [shape: f32[4,128,128], index: 1, kind: input, shape index: {}]
  %s2 = inlined_call_operand.hbm [shape: f32[4,128,128], index: 2, kind: output, shape index: {}]
  %s3 = sld [smem:[#allocation0]]
  $region26: #{tpu_custom_call.1} parent=0
    _
  %s5 = ssub.s32 1, %s3
  %s6 = scalar_select 0, %s5, %s3
  $region1: #{tpu_custom_call.1} parent=0
    #allocation2 [shape = 'u8[262144]{0}', space=vmem, size = 0x40000, scoped, tag = 'input window, operand 0, single buffered']
    #allocation3 [shape = 's32[1]{0}', space=sflag, size = 0x4, scoped, tag = 'scoped memory for tpu_custom_call.1']
    #allocation4 [shape = 's32[1]{0}', space=sflag, size = 0x4, scoped, tag = 'scoped memory for tpu_custom_call.1']
    #allocation5 [shape = 'u8[262144]{0}', space=vmem, size = 0x40000, scoped, tag = 'input window, operand 1, single buffered']
    #allocation6 [shape = 's32[1]{0}', space=sflag, size = 0x4, scoped, tag = 'scoped memory for tpu_custom_call.1']
    #allocation7 [shape = 'u8[262144]{0}', space=vmem, size = 0x40000, scoped, tag = 'output window, operand 0, single buffered']
    %7 = vsyncpa [#allocation3], 0
    %8 = vsyncpa [#allocation6], 0
    %9 = vsyncpa [#allocation4], 0
    // Predicated region
    $region2: #{tpu_custom_call.1} parent=1 // pred_check
      _
    $region3: #{tpu_custom_call.1} parent=1 // pred_check_branch
      %11 = sbr.rel (0) target = $region5
    $region4: #{tpu_custom_call.1} parent=1 // pred_region
      %s13 = ssub.s32 8192, 8192
      %14 = vsyncadd [#allocation3], %s13
      %s15 = sshll.u32 [#allocation2], 4
      %s16 = int_to_ptr.vmem [resolvable:$true] %s15
      %21 = dma.hbm_to_vmem [thread:$0]  %s0, 8192, %s16, [#allocation3], 128, 128, 8
    $region5: #{tpu_custom_call.1} parent=1 // pred_fallthru
      _
    // Predicated region
    $region6: #{tpu_custom_call.1} parent=1 // pred_check
      _
    $region7: #{tpu_custom_call.1} parent=1 // pred_check_branch
      %23 = sbr.rel (0) target = $region9
    $region8: #{tpu_custom_call.1} parent=1 // pred_region
      %s25 = ssub.s32 8192, 8192
      %26 = vsyncadd [#allocation6], %s25
      %s27 = sshll.u32 [#allocation5], 4
      %s28 = int_to_ptr.vmem [resolvable:$true] %s27
      %33 = dma.hbm_to_vmem [thread:$0]  %s1, 8192, %s28, [#allocation6], 128, 128, 8
    $region9: #{tpu_custom_call.1} parent=1 // pred_fallthru
      _
    // Predicated region
    $region10: #{tpu_custom_call.1} parent=1 // pred_check
      _
    $region11: #{tpu_custom_call.1} parent=1 // pred_check_branch
      %35 = sbr.rel (0) target = $region13
    $region12: #{tpu_custom_call.1} parent=1 // pred_region
      %36 = dma.done [#allocation3], 8192
    $region13: #{tpu_custom_call.1} parent=1 // pred_fallthru
      _
    // Predicated region
    $region14: #{tpu_custom_call.1} parent=1 // pred_check
      _
    $region15: #{tpu_custom_call.1} parent=1 // pred_check_branch
      %38 = sbr.rel (0) target = $region17
    $region16: #{tpu_custom_call.1} parent=1 // pred_region
      %39 = dma.done [#allocation6], 8192
    $region17: #{tpu_custom_call.1} parent=1 // pred_fallthru
      _
    %v40 = vld [vmem:[#allocation2] sm:$0xff]
    %v41 = vld [vmem:[#allocation2 + $0x8] sm:$0xff]
    %v42 = vld [vmem:[#allocation2 + $0x10] sm:$0xff]
    %v43 = vld [vmem:[#allocation2 + $0x18] sm:$0xff]
    %v44 = vld [vmem:[#allocation2 + $0x20] sm:$0xff]
    %v45 = vld [vmem:[#allocation2 + $0x28] sm:$0xff]
    %v46 = vld [vmem:[#allocation2 + $0x30] sm:$0xff]
    %v47 = vld [vmem:[#allocation2 + $0x38] sm:$0xff]
    %v48 = vld [vmem:[#allocation2 + $0x40] sm:$0xff]
    %v49 = vld [vmem:[#allocation2 + $0x48] sm:$0xff]
    %v50 = vld [vmem:[#allocation2 + $0x50] sm:$0xff]
    %v51 = vld [vmem:[#allocation2 + $0x58] sm:$0xff]
    %v52 = vld [vmem:[#allocation2 + $0x60] sm:$0xff]
    %v53 = vld [vmem:[#allocation2 + $0x68] sm:$0xff]
    %v54 = vld [vmem:[#allocation2 + $0x70] sm:$0xff]
    %v55 = vld [vmem:[#allocation2 + $0x78] sm:$0xff]
    %v56 = vld [vmem:[#allocation5] sm:$0xff]
    %v57 = vld [vmem:[#allocation5 + $0x8] sm:$0xff]
    %v58 = vld [vmem:[#allocation5 + $0x10] sm:$0xff]
    %v59 = vld [vmem:[#allocation5 + $0x18] sm:$0xff]
    %v60 = vld [vmem:[#allocation5 + $0x20] sm:$0xff]
    %v61 = vld [vmem:[#allocation5 + $0x28] sm:$0xff]
    %v62 = vld [vmem:[#allocation5 + $0x30] sm:$0xff]
    %v63 = vld [vmem:[#allocation5 + $0x38] sm:$0xff]
    %v64 = vld [vmem:[#allocation5 + $0x40] sm:$0xff]
    %v65 = vld [vmem:[#allocation5 + $0x48] sm:$0xff]
    %v66 = vld [vmem:[#allocation5 + $0x50] sm:$0xff]
    %v67 = vld [vmem:[#allocation5 + $0x58] sm:$0xff]
    %v68 = vld [vmem:[#allocation5 + $0x60] sm:$0xff]
    %v69 = vld [vmem:[#allocation5 + $0x68] sm:$0xff]
    %v70 = vld [vmem:[#allocation5 + $0x70] sm:$0xff]
    %v71 = vld [vmem:[#allocation5 + $0x78] sm:$0xff]
    %72 = vmatprep.subr.mxu0 0.0
    %73 = vmatpush1.msra.mxu0 %v56
    %74 = vmatprep.subr.mxu0 0.0
    %75 = vmatpush1.msra.mxu0 %v57
    %76 = vmatprep.subr.mxu0 0.0
    %77 = vmatpush1.msra.mxu0 %v58
    %78 = vmatprep.subr.mxu0 0.0
    %79 = vmatpush1.msra.mxu0 %v59
    %80 = vmatprep.subr.mxu0 0.0
    %81 = vmatpush1.msra.mxu0 %v60
    %82 = vmatprep.subr.mxu0 0.0
    %83 = vmatpush1.msra.mxu0 %v61
    %84 = vmatprep.subr.mxu0 0.0
    %85 = vmatpush1.msra.mxu0 %v62
    %86 = vmatprep.subr.mxu0 0.0
    %87 = vmatpush1.msra.mxu0 %v63
    %88 = vmatprep.subr.mxu0 0.0
    %89 = vmatpush1.msra.mxu0 %v64
    %90 = vmatprep.subr.mxu0 0.0
    %91 = vmatpush1.msra.mxu0 %v65
    %92 = vmatprep.subr.mxu0 0.0
    %93 = vmatpush1.msra.mxu0 %v66
    %94 = vmatprep.subr.mxu0 0.0
    %95 = vmatpush1.msra.mxu0 %v67
    %96 = vmatprep.subr.mxu0 0.0
    %97 = vmatpush1.msra.mxu0 %v68
    %98 = vmatprep.subr.mxu0 0.0
    %99 = vmatpush1.msra.mxu0 %v69
    %100 = vmatprep.subr.mxu0 0.0
    %101 = vmatpush1.msra.mxu0 %v70
    %102 = vmatprep.subr.mxu0 0.0
    %103 = vmatpush1.msra.mxu0 %v71
    %104 = vmatprep.subr.mxu0 0.0
    %105 = vmatpush1.msra.mxu0 0.0
    %106 = vmatprep.subr.mxu0 0.0
    %107 = vmatpush1.msra.mxu0 0.0
    %108 = vmatprep.subr.mxu0 0.0
    %109 = vmatpush1.msra.mxu0 0.0
    %110 = vmatprep.subr.mxu0 0.0
    %111 = vmatpush1.msra.mxu0 0.0
    %112 = vmatprep.subr.mxu0 0.0
    %113 = vmatpush1.msra.mxu0 0.0
    %114 = vmatprep.subr.mxu0 0.0
    %115 = vmatpush1.msra.mxu0 0.0
    %116 = vmatprep.subr.mxu0 0.0
    %117 = vmatpush1.msra.mxu0 0.0
    %118 = vmatprep.subr.mxu0 0.0
    %119 = vmatpush1.msra.mxu0 0.0
    %120 = vmatprep.subr.mxu0 0.0
    %121 = vmatpush1.msra.mxu0 0.0
    %122 = vmatprep.subr.mxu0 0.0
    %123 = vmatpush1.msra.mxu0 0.0
    %124 = vmatprep.subr.mxu0 0.0
    %125 = vmatpush1.msra.mxu0 0.0
    %126 = vmatprep.subr.mxu0 0.0
    %127 = vmatpush1.msra.mxu0 0.0
    %128 = vmatprep.subr.mxu0 0.0
    %129 = vmatpush1.msra.mxu0 0.0
    %130 = vmatprep.subr.mxu0 0.0
    %131 = vmatpush1.msra.mxu0 0.0
    %132 = vmatprep.subr.mxu0 0.0
    %133 = vmatpush1.msra.mxu0 0.0
    %134 = vmatprep.subr.mxu0 0.0
    %135 = vmatpush1.msra.mxu0 0.0
    %136 = vmatprep.mubr.f32.mxu0 0.0
    %137 = vmatmul.mubr.f32.gmra.mrb[0].mxu0 %v40
    %v138 = vpop.f32.mrb[0].mxu0
    %v139 = vadd.f32 0.0, %v138
    %v140 = vpop.f32.mrb[0].mxu0
    %141 = vmatprep.mubr.f32.mxu0 0.0
    %142 = vmatmul.mubr.f32.gmra.mrb[0].mxu0 %v41
    %v143 = vpop.f32.mrb[0].mxu0
    %v144 = vadd.f32 0.0, %v143
    %v145 = vpop.f32.mrb[0].mxu0
    %146 = vmatprep.mubr.f32.mxu0 0.0
    %147 = vmatmul.mubr.f32.gmra.mrb[0].mxu0 %v42
    %v148 = vpop.f32.mrb[0].mxu0
    %v149 = vadd.f32 0.0, %v148
    %v150 = vpop.f32.mrb[0].mxu0
    %151 = vmatprep.mubr.f32.mxu0 0.0
    %152 = vmatmul.mubr.f32.gmra.mrb[0].mxu0 %v43
    %v153 = vpop.f32.mrb[0].mxu0
    %v154 = vadd.f32 0.0, %v153
    %v155 = vpop.f32.mrb[0].mxu0
    %156 = vmatprep.mubr.f32.mxu0 0.0
    %157 = vmatmul.mubr.f32.gmra.mrb[0].mxu0 %v44
    %v158 = vpop.f32.mrb[0].mxu0
    %v159 = vadd.f32 0.0, %v158
    %v160 = vpop.f32.mrb[0].mxu0
    %161 = vmatprep.mubr.f32.mxu0 0.0
    %162 = vmatmul.mubr.f32.gmra.mrb[0].mxu0 %v45
    %v163 = vpop.f32.mrb[0].mxu0
    %v164 = vadd.f32 0.0, %v163
    %v165 = vpop.f32.mrb[0].mxu0
    %166 = vmatprep.mubr.f32.mxu0 0.0
    %167 = vmatmul.mubr.f32.gmra.mrb[0].mxu0 %v46
    %v168 = vpop.f32.mrb[0].mxu0
    %v169 = vadd.f32 0.0, %v168
    %v170 = vpop.f32.mrb[0].mxu0
    %171 = vmatprep.mubr.f32.mxu0 0.0
    %172 = vmatmul.mubr.f32.gmra.mrb[0].mxu0 %v47
    %v173 = vpop.f32.mrb[0].mxu0
    %v174 = vadd.f32 0.0, %v173
    %v175 = vpop.f32.mrb[0].mxu0
    %176 = vmatprep.mubr.f32.mxu0 0.0
    %177 = vmatmul.mubr.f32.gmra.mrb[0].mxu0 %v48
    %v178 = vpop.f32.mrb[0].mxu0
    %v179 = vadd.f32 0.0, %v178
    %v180 = vpop.f32.mrb[0].mxu0
    %181 = vmatprep.mubr.f32.mxu0 0.0
    %182 = vmatmul.mubr.f32.gmra.mrb[0].mxu0 %v49
    %v183 = vpop.f32.mrb[0].mxu0
    %v184 = vadd.f32 0.0, %v183
    %v185 = vpop.f32.mrb[0].mxu0
    %186 = vmatprep.mubr.f32.mxu0 0.0
    %187 = vmatmul.mubr.f32.gmra.mrb[0].mxu0 %v50
    %v188 = vpop.f32.mrb[0].mxu0
    %v189 = vadd.f32 0.0, %v188
    %v190 = vpop.f32.mrb[0].mxu0
    %191 = vmatprep.mubr.f32.mxu0 0.0
    %192 = vmatmul.mubr.f32.gmra.mrb[0].mxu0 %v51
    %v193 = vpop.f32.mrb[0].mxu0
    %v194 = vadd.f32 0.0, %v193
    %v195 = vpop.f32.mrb[0].mxu0
    %196 = vmatprep.mubr.f32.mxu0 0.0
    %197 = vmatmul.mubr.f32.gmra.mrb[0].mxu0 %v52
    %v198 = vpop.f32.mrb[0].mxu0
    %v199 = vadd.f32 0.0, %v198
    %v200 = vpop.f32.mrb[0].mxu0
    %201 = vmatprep.mubr.f32.mxu0 0.0
    %202 = vmatmul.mubr.f32.gmra.mrb[0].mxu0 %v53
    %v203 = vpop.f32.mrb[0].mxu0
    %v204 = vadd.f32 0.0, %v203
    %v205 = vpop.f32.mrb[0].mxu0
    %206 = vmatprep.mubr.f32.mxu0 0.0
    %207 = vmatmul.mubr.f32.gmra.mrb[0].mxu0 %v54
    %v208 = vpop.f32.mrb[0].mxu0
    %v209 = vadd.f32 0.0, %v208
    %v210 = vpop.f32.mrb[0].mxu0
    %211 = vmatprep.mubr.f32.mxu0 0.0
    %212 = vmatmul.mubr.f32.gmra.mrb[0].mxu0 %v55
    %v213 = vpop.f32.mrb[0].mxu0
    %v214 = vadd.f32 0.0, %v213
    %v215 = vpop.f32.mrb[0].mxu0
    %216 = vdwg.mxu0
    %217 = vst [vmem:[#allocation7] sm:$0xff] %v139
    %218 = vst [vmem:[#allocation7 + $0x8] sm:$0xff] %v144
    %219 = vst [vmem:[#allocation7 + $0x10] sm:$0xff] %v149
    %220 = vst [vmem:[#allocation7 + $0x18] sm:$0xff] %v154
    %221 = vst [vmem:[#allocation7 + $0x20] sm:$0xff] %v159
    %222 = vst [vmem:[#allocation7 + $0x28] sm:$0xff] %v164
    %223 = vst [vmem:[#allocation7 + $0x30] sm:$0xff] %v169
    %224 = vst [vmem:[#allocation7 + $0x38] sm:$0xff] %v174
    %225 = vst [vmem:[#allocation7 + $0x40] sm:$0xff] %v179
    %226 = vst [vmem:[#allocation7 + $0x48] sm:$0xff] %v184
    %227 = vst [vmem:[#allocation7 + $0x50] sm:$0xff] %v189
    %228 = vst [vmem:[#allocation7 + $0x58] sm:$0xff] %v194
    %229 = vst [vmem:[#allocation7 + $0x60] sm:$0xff] %v199
    %230 = vst [vmem:[#allocation7 + $0x68] sm:$0xff] %v204
    %231 = vst [vmem:[#allocation7 + $0x70] sm:$0xff] %v209
    %232 = vst [vmem:[#allocation7 + $0x78] sm:$0xff] %v214
    %s233 = scalar_lea.vmem [#allocation2], 128
    %v234 = vld [vmem:[%s233] sm:$0xff]
    %v235 = vld [vmem:[%s233 + $0x8] sm:$0xff]
    %v236 = vld [vmem:[%s233 + $0x10] sm:$0xff]
    %v237 = vld [vmem:[%s233 + $0x18] sm:$0xff]
    %v238 = vld [vmem:[%s233 + $0x20] sm:$0xff]
    %v239 = vld [vmem:[%s233 + $0x28] sm:$0xff]
    %v240 = vld [vmem:[%s233 + $0x30] sm:$0xff]
    %v241 = vld [vmem:[%s233 + $0x38] sm:$0xff]
    %v242 = vld [vmem:[%s233 + $0x40] sm:$0xff]
    %v243 = vld [vmem:[%s233 + $0x48] sm:$0xff]
    %v244 = vld [vmem:[%s233 + $0x50] sm:$0xff]
    %v245 = vld [vmem:[%s233 + $0x58] sm:$0xff]
    %v246 = vld [vmem:[%s233 + $0x60] sm:$0xff]
    %v247 = vld [vmem:[%s233 + $0x68] sm:$0xff]
    %v248 = vld [vmem:[%s233 + $0x70] sm:$0xff]
    %v249 = vld [vmem:[%s233 + $0x78] sm:$0xff]
    %s250 = scalar_lea.vmem [#allocation5], 128
    %v251 = vld [vmem:[%s250] sm:$0xff]
    %v252 = vld [vmem:[%s250 + $0x8] sm:$0xff]
    %v253 = vld [vmem:[%s250 + $0x10] sm:$0xff]
    %v254 = vld [vmem:[%s250 + $0x18] sm:$0xff]
    %v255 = vld [vmem:[%s250 + $0x20] sm:$0xff]
    %v256 = vld [vmem:[%s250 + $0x28] sm:$0xff]
    %v257 = vld [vmem:[%s250 + $0x30] sm:$0xff]
    %v258 = vld [vmem:[%s250 + $0x38] sm:$0xff]
    %v259 = vld [vmem:[%s250 + $0x40] sm:$0xff]
    %v260 = vld [vmem:[%s250 + $0x48] sm:$0xff]
    %v261 = vld [vmem:[%s250 + $0x50] sm:$0xff]
    %v262 = vld [vmem:[%s250 + $0x58] sm:$0xff]
    %v263 = vld [vmem:[%s250 + $0x60] sm:$0xff]
    %v264 = vld [vmem:[%s250 + $0x68] sm:$0xff]
    %v265 = vld [vmem:[%s250 + $0x70] sm:$0xff]
    %v266 = vld [vmem:[%s250 + $0x78] sm:$0xff]
    %267 = vmatprep.subr.mxu0 0.0
    %268 = vmatpush1.msra.mxu0 %v251
    %269 = vmatprep.subr.mxu0 0.0
    %270 = vmatpush1.msra.mxu0 %v252
    %271 = vmatprep.subr.mxu0 0.0
    %272 = vmatpush1.msra.mxu0 %v253
    %273 = vmatprep.subr.mxu0 0.0
    %274 = vmatpush1.msra.mxu0 %v254
    %275 = vmatprep.subr.mxu0 0.0
    %276 = vmatpush1.msra.mxu0 %v255
    %277 = vmatprep.subr.mxu0 0.0
    %278 = vmatpush1.msra.mxu0 %v256
    %279 = vmatprep.subr.mxu0 0.0
    %280 = vmatpush1.msra.mxu0 %v257
    %281 = vmatprep.subr.mxu0 0.0
    %282 = vmatpush1.msra.mxu0 %v258
    %283 = vmatprep.subr.mxu0 0.0
    %284 = vmatpush1.msra.mxu0 %v259
    %285 = vmatprep.subr.mxu0 0.0
    %286 = vmatpush1.msra.mxu0 %v260
    %287 = vmatprep.subr.mxu0 0.0
    %288 = vmatpush1.msra.mxu0 %v261
    %289 = vmatprep.subr.mxu0 0.0
    %290 = vmatpush1.msra.mxu0 %v262
    %291 = vmatprep.subr.mxu0 0.0
    %292 = vmatpush1.msra.mxu0 %v263
    %293 = vmatprep.subr.mxu0 0.0
    %294 = vmatpush1.msra.mxu0 %v264
    %295 = vmatprep.subr.mxu0 0.0
    %296 = vmatpush1.msra.mxu0 %v265
    %297 = vmatprep.subr.mxu0 0.0
    %298 = vmatpush1.msra.mxu0 %v266
    %299 = vmatprep.subr.mxu0 0.0
    %300 = vmatpush1.msra.mxu0 0.0
    %301 = vmatprep.subr.mxu0 0.0
    %302 = vmatpush1.msra.mxu0 0.0
    %303 = vmatprep.subr.mxu0 0.0
    %304 = vmatpush1.msra.mxu0 0.0
    %305 = vmatprep.subr.mxu0 0.0
    %306 = vmatpush1.msra.mxu0 0.0
    %307 = vmatprep.subr.mxu0 0.0
    %308 = vmatpush1.msra.mxu0 0.0
    %309 = vmatprep.subr.mxu0 0.0
    %310 = vmatpush1.msra.mxu0 0.0
    %311 = vmatprep.subr.mxu0 0.0
    %312 = vmatpush1.msra.mxu0 0.0
    %313 = vmatprep.subr.mxu0 0.0
    %314 = vmatpush1.msra.mxu0 0.0
    %315 = vmatprep.subr.mxu0 0.0
    %316 = vmatpush1.msra.mxu0 0.0
    %317 = vmatprep.subr.mxu0 0.0
    %318 = vmatpush1.msra.mxu0 0.0
    %319 = vmatprep.subr.mxu0 0.0
    %320 = vmatpush1.msra.mxu0 0.0
    %321 = vmatprep.subr.mxu0 0.0
    %322 = vmatpush1.msra.mxu0 0.0
    %323 = vmatprep.subr.mxu0 0.0
    %324 = vmatpush1.msra.mxu0 0.0
    %325 = vmatprep.subr.mxu0 0.0
    %326 = vmatpush1.msra.mxu0 0.0
    %327 = vmatprep.subr.mxu0 0.0
    %328 = vmatpush1.msra.mxu0 0.0
    %329 = vmatprep.subr.mxu0 0.0
    %330 = vmatpush1.msra.mxu0 0.0
    %331 = vmatprep.mubr.f32.mxu0 0.0
    %332 = vmatmul.mubr.f32.gmra.mrb[0].mxu0 %v234
    %v333 = vpop.f32.mrb[0].mxu0
    %v334 = vadd.f32 0.0, %v333
    %v335 = vpop.f32.mrb[0].mxu0
    %336 = vmatprep.mubr.f32.mxu0 0.0
    %337 = vmatmul.mubr.f32.gmra.mrb[0].mxu0 %v235
    %v338 = vpop.f32.mrb[0].mxu0
    %v339 = vadd.f32 0.0, %v338
    %v340 = vpop.f32.mrb[0].mxu0
    %341 = vmatprep.mubr.f32.mxu0 0.0
    %342 = vmatmul.mubr.f32.gmra.mrb[0].mxu0 %v236
    %v343 = vpop.f32.mrb[0].mxu0
    %v344 = vadd.f32 0.0, %v343
    %v345 = vpop.f32.mrb[0].mxu0
    %346 = vmatprep.mubr.f32.mxu0 0.0
    %347 = vmatmul.mubr.f32.gmra.mrb[0].mxu0 %v237
    %v348 = vpop.f32.mrb[0].mxu0
    %v349 = vadd.f32 0.0, %v348
    %v350 = vpop.f32.mrb[0].mxu0
    %351 = vmatprep.mubr.f32.mxu0 0.0
    %352 = vmatmul.mubr.f32.gmra.mrb[0].mxu0 %v238
    %v353 = vpop.f32.mrb[0].mxu0
    %v354 = vadd.f32 0.0, %v353
    %v355 = vpop.f32.mrb[0].mxu0
    %356 = vmatprep.mubr.f32.mxu0 0.0
    %357 = vmatmul.mubr.f32.gmra.mrb[0].mxu0 %v239
    %v358 = vpop.f32.mrb[0].mxu0
    %v359 = vadd.f32 0.0, %v358
    %v360 = vpop.f32.mrb[0].mxu0
    %361 = vmatprep.mubr.f32.mxu0 0.0
    %362 = vmatmul.mubr.f32.gmra.mrb[0].mxu0 %v240
    %v363 = vpop.f32.mrb[0].mxu0
    %v364 = vadd.f32 0.0, %v363
    %v365 = vpop.f32.mrb[0].mxu0
    %366 = vmatprep.mubr.f32.mxu0 0.0
    %367 = vmatmul.mubr.f32.gmra.mrb[0].mxu0 %v241
    %v368 = vpop.f32.mrb[0].mxu0
    %v369 = vadd.f32 0.0, %v368
    %v370 = vpop.f32.mrb[0].mxu0
    %371 = vmatprep.mubr.f32.mxu0 0.0
    %372 = vmatmul.mubr.f32.gmra.mrb[0].mxu0 %v242
    %v373 = vpop.f32.mrb[0].mxu0
    %v374 = vadd.f32 0.0, %v373
    %v375 = vpop.f32.mrb[0].mxu0
    %376 = vmatprep.mubr.f32.mxu0 0.0
    %377 = vmatmul.mubr.f32.gmra.mrb[0].mxu0 %v243
    %v378 = vpop.f32.mrb[0].mxu0
    %v379 = vadd.f32 0.0, %v378
    %v380 = vpop.f32.mrb[0].mxu0
    %381 = vmatprep.mubr.f32.mxu0 0.0
    %382 = vmatmul.mubr.f32.gmra.mrb[0].mxu0 %v244
    %v383 = vpop.f32.mrb[0].mxu0
    %v384 = vadd.f32 0.0, %v383
    %v385 = vpop.f32.mrb[0].mxu0
    %386 = vmatprep.mubr.f32.mxu0 0.0
    %387 = vmatmul.mubr.f32.gmra.mrb[0].mxu0 %v245
    %v388 = vpop.f32.mrb[0].mxu0
    %v389 = vadd.f32 0.0, %v388
    %v390 = vpop.f32.mrb[0].mxu0
    %391 = vmatprep.mubr.f32.mxu0 0.0
    %392 = vmatmul.mubr.f32.gmra.mrb[0].mxu0 %v246
    %v393 = vpop.f32.mrb[0].mxu0
    %v394 = vadd.f32 0.0, %v393
    %v395 = vpop.f32.mrb[0].mxu0
    %396 = vmatprep.mubr.f32.mxu0 0.0
    %397 = vmatmul.mubr.f32.gmra.mrb[0].mxu0 %v247
    %v398 = vpop.f32.mrb[0].mxu0
    %v399 = vadd.f32 0.0, %v398
    %v400 = vpop.f32.mrb[0].mxu0
    %401 = vmatprep.mubr.f32.mxu0 0.0
    %402 = vmatmul.mubr.f32.gmra.mrb[0].mxu0 %v248
    %v403 = vpop.f32.mrb[0].mxu0
    %v404 = vadd.f32 0.0, %v403
    %v405 = vpop.f32.mrb[0].mxu0
    %406 = vmatprep.mubr.f32.mxu0 0.0
    %407 = vmatmul.mubr.f32.gmra.mrb[0].mxu0 %v249
    %v408 = vpop.f32.mrb[0].mxu0
    %v409 = vadd.f32 0.0, %v408
    %v410 = vpop.f32.mrb[0].mxu0
    %411 = vdwg.mxu0
    %s412 = scalar_lea.vmem [#allocation7], 128
    %413 = vst [vmem:[%s412] sm:$0xff] %v334
    %414 = vst [vmem:[%s412 + $0x8] sm:$0xff] %v339
    %415 = vst [vmem:[%s412 + $0x10] sm:$0xff] %v344
    %416 = vst [vmem:[%s412 + $0x18] sm:$0xff] %v349
    %417 = vst [vmem:[%s412 + $0x20] sm:$0xff] %v354
    %418 = vst [vmem:[%s412 + $0x28] sm:$0xff] %v359
    %419 = vst [vmem:[%s412 + $0x30] sm:$0xff] %v364
    %420 = vst [vmem:[%s412 + $0x38] sm:$0xff] %v369
    %421 = vst [vmem:[%s412 + $0x40] sm:$0xff] %v374
    %422 = vst [vmem:[%s412 + $0x48] sm:$0xff] %v379
    %423 = vst [vmem:[%s412 + $0x50] sm:$0xff] %v384
    %424 = vst [vmem:[%s412 + $0x58] sm:$0xff] %v389
    %425 = vst [vmem:[%s412 + $0x60] sm:$0xff] %v394
    %426 = vst [vmem:[%s412 + $0x68] sm:$0xff] %v399
    %427 = vst [vmem:[%s412 + $0x70] sm:$0xff] %v404
    %428 = vst [vmem:[%s412 + $0x78] sm:$0xff] %v409
    %s429 = scalar_lea.vmem [#allocation2], 256
    %v430 = vld [vmem:[%s429] sm:$0xff]
    %v431 = vld [vmem:[%s429 + $0x8] sm:$0xff]
    %v432 = vld [vmem:[%s429 + $0x10] sm:$0xff]
    %v433 = vld [vmem:[%s429 + $0x18] sm:$0xff]
    %v434 = vld [vmem:[%s429 + $0x20] sm:$0xff]
    %v435 = vld [vmem:[%s429 + $0x28] sm:$0xff]
    %v436 = vld [vmem:[%s429 + $0x30] sm:$0xff]
    %v437 = vld [vmem:[%s429 + $0x38] sm:$0xff]
    %v438 = vld [vmem:[%s429 + $0x40] sm:$0xff]
    %v439 = vld [vmem:[%s429 + $0x48] sm:$0xff]
    %v440 = vld [vmem:[%s429 + $0x50] sm:$0xff]
    %v441 = vld [vmem:[%s429 + $0x58] sm:$0xff]
    %v442 = vld [vmem:[%s429 + $0x60] sm:$0xff]
    %v443 = vld [vmem:[%s429 + $0x68] sm:$0xff]
    %v444 = vld [vmem:[%s429 + $0x70] sm:$0xff]
    %v445 = vld [vmem:[%s429 + $0x78] sm:$0xff]
    %s446 = scalar_lea.vmem [#allocation5], 256
    %v447 = vld [vmem:[%s446] sm:$0xff]
    %v448 = vld [vmem:[%s446 + $0x8] sm:$0xff]
    %v449 = vld [vmem:[%s446 + $0x10] sm:$0xff]
    %v450 = vld [vmem:[%s446 + $0x18] sm:$0xff]
    %v451 = vld [vmem:[%s446 + $0x20] sm:$0xff]
    %v452 = vld [vmem:[%s446 + $0x28] sm:$0xff]
    %v453 = vld [vmem:[%s446 + $0x30] sm:$0xff]
    %v454 = vld [vmem:[%s446 + $0x38] sm:$0xff]
    %v455 = vld [vmem:[%s446 + $0x40] sm:$0xff]
    %v456 = vld [vmem:[%s446 + $0x48] sm:$0xff]
    %v457 = vld [vmem:[%s446 + $0x50] sm:$0xff]
    %v458 = vld [vmem:[%s446 + $0x58] sm:$0xff]
    %v459 = vld [vmem:[%s446 + $0x60] sm:$0xff]
    %v460 = vld [vmem:[%s446 + $0x68] sm:$0xff]
    %v461 = vld [vmem:[%s446 + $0x70] sm:$0xff]
    %v462 = vld [vmem:[%s446 + $0x78] sm:$0xff]
    %463 = vmatprep.subr.mxu0 0.0
    %464 = vmatpush1.msra.mxu0 %v447
    %465 = vmatprep.subr.mxu0 0.0
    %466 = vmatpush1.msra.mxu0 %v448
    %467 = vmatprep.subr.mxu0 0.0
    %468 = vmatpush1.msra.mxu0 %v449
    %469 = vmatprep.subr.mxu0 0.0
    %470 = vmatpush1.msra.mxu0 %v450
    %471 = vmatprep.subr.mxu0 0.0
    %472 = vmatpush1.msra.mxu0 %v451
    %473 = vmatprep.subr.mxu0 0.0
    %474 = vmatpush1.msra.mxu0 %v452
    %475 = vmatprep.subr.mxu0 0.0
    %476 = vmatpush1.msra.mxu0 %v453
    %477 = vmatprep.subr.mxu0 0.0
    %478 = vmatpush1.msra.mxu0 %v454
    %479 = vmatprep.subr.mxu0 0.0
    %480 = vmatpush1.msra.mxu0 %v455
    %481 = vmatprep.subr.mxu0 0.0
    %482 = vmatpush1.msra.mxu0 %v456
    %483 = vmatprep.subr.mxu0 0.0
    %484 = vmatpush1.msra.mxu0 %v457
    %485 = vmatprep.subr.mxu0 0.0
    %486 = vmatpush1.msra.mxu0 %v458
    %487 = vmatprep.subr.mxu0 0.0
    %488 = vmatpush1.msra.mxu0 %v459
    %489 = vmatprep.subr.mxu0 0.0
    %490 = vmatpush1.msra.mxu0 %v460
    %491 = vmatprep.subr.mxu0 0.0
    %492 = vmatpush1.msra.mxu0 %v461
    %493 = vmatprep.subr.mxu0 0.0
    %494 = vmatpush1.msra.mxu0 %v462
    %495 = vmatprep.subr.mxu0 0.0
    %496 = vmatpush1.msra.mxu0 0.0
    %497 = vmatprep.subr.mxu0 0.0
    %498 = vmatpush1.msra.mxu0 0.0
    %499 = vmatprep.subr.mxu0 0.0
    %500 = vmatpush1.msra.mxu0 0.0
    %501 = vmatprep.subr.mxu0 0.0
    %502 = vmatpush1.msra.mxu0 0.0
    %503 = vmatprep.subr.mxu0 0.0
    %504 = vmatpush1.msra.mxu0 0.0
    %505 = vmatprep.subr.mxu0 0.0
    %506 = vmatpush1.msra.mxu0 0.0
    %507 = vmatprep.subr.mxu0 0.0
    %508 = vmatpush1.msra.mxu0 0.0
    %509 = vmatprep.subr.mxu0 0.0
    %510 = vmatpush1.msra.mxu0 0.0
    %511 = vmatprep.subr.mxu0 0.0
    %512 = vmatpush1.msra.mxu0 0.0
    %513 = vmatprep.subr.mxu0 0.0
    %514 = vmatpush1.msra.mxu0 0.0
    %515 = vmatprep.subr.mxu0 0.0
    %516 = vmatpush1.msra.mxu0 0.0
    %517 = vmatprep.subr.mxu0 0.0
    %518 = vmatpush1.msra.mxu0 0.0
    %519 = vmatprep.subr.mxu0 0.0
    %520 = vmatpush1.msra.mxu0 0.0
    %521 = vmatprep.subr.mxu0 0.0
    %522 = vmatpush1.msra.mxu0 0.0
    %523 = vmatprep.subr.mxu0 0.0
    %524 = vmatpush1.msra.mxu0 0.0
    %525 = vmatprep.subr.mxu0 0.0
    %526 = vmatpush1.msra.mxu0 0.0
    %527 = vmatprep.mubr.f32.mxu0 0.0
    %528 = vmatmul.mubr.f32.gmra.mrb[0].mxu0 %v430
    %v529 = vpop.f32.mrb[0].mxu0
    %v530 = vadd.f32 0.0, %v529
    %v531 = vpop.f32.mrb[0].mxu0
    %532 = vmatprep.mubr.f32.mxu0 0.0
    %533 = vmatmul.mubr.f32.gmra.mrb[0].mxu0 %v431
    %v534 = vpop.f32.mrb[0].mxu0
    %v535 = vadd.f32 0.0, %v534
    %v536 = vpop.f32.mrb[0].mxu0
    %537 = vmatprep.mubr.f32.mxu0 0.0
    %538 = vmatmul.mubr.f32.gmra.mrb[0].mxu0 %v432
    %v539 = vpop.f32.mrb[0].mxu0
    %v540 = vadd.f32 0.0, %v539
    %v541 = vpop.f32.mrb[0].mxu0
    %542 = vmatprep.mubr.f32.mxu0 0.0
    %543 = vmatmul.mubr.f32.gmra.mrb[0].mxu0 %v433
    %v544 = vpop.f32.mrb[0].mxu0
    %v545 = vadd.f32 0.0, %v544
    %v546 = vpop.f32.mrb[0].mxu0
    %547 = vmatprep.mubr.f32.mxu0 0.0
    %548 = vmatmul.mubr.f32.gmra.mrb[0].mxu0 %v434
    %v549 = vpop.f32.mrb[0].mxu0
    %v550 = vadd.f32 0.0, %v549
    %v551 = vpop.f32.mrb[0].mxu0
    %552 = vmatprep.mubr.f32.mxu0 0.0
    %553 = vmatmul.mubr.f32.gmra.mrb[0].mxu0 %v435
    %v554 = vpop.f32.mrb[0].mxu0
    %v555 = vadd.f32 0.0, %v554
    %v556 = vpop.f32.mrb[0].mxu0
    %557 = vmatprep.mubr.f32.mxu0 0.0
    %558 = vmatmul.mubr.f32.gmra.mrb[0].mxu0 %v436
    %v559 = vpop.f32.mrb[0].mxu0
    %v560 = vadd.f32 0.0, %v559
    %v561 = vpop.f32.mrb[0].mxu0
    %562 = vmatprep.mubr.f32.mxu0 0.0
    %563 = vmatmul.mubr.f32.gmra.mrb[0].mxu0 %v437
    %v564 = vpop.f32.mrb[0].mxu0
    %v565 = vadd.f32 0.0, %v564
    %v566 = vpop.f32.mrb[0].mxu0
    %567 = vmatprep.mubr.f32.mxu0 0.0
    %568 = vmatmul.mubr.f32.gmra.mrb[0].mxu0 %v438
    %v569 = vpop.f32.mrb[0].mxu0
    %v570 = vadd.f32 0.0, %v569
    %v571 = vpop.f32.mrb[0].mxu0
    %572 = vmatprep.mubr.f32.mxu0 0.0
    %573 = vmatmul.mubr.f32.gmra.mrb[0].mxu0 %v439
    %v574 = vpop.f32.mrb[0].mxu0
    %v575 = vadd.f32 0.0, %v574
    %v576 = vpop.f32.mrb[0].mxu0
    %577 = vmatprep.mubr.f32.mxu0 0.0
    %578 = vmatmul.mubr.f32.gmra.mrb[0].mxu0 %v440
    %v579 = vpop.f32.mrb[0].mxu0
    %v580 = vadd.f32 0.0, %v579
    %v581 = vpop.f32.mrb[0].mxu0
    %582 = vmatprep.mubr.f32.mxu0 0.0
    %583 = vmatmul.mubr.f32.gmra.mrb[0].mxu0 %v441
    %v584 = vpop.f32.mrb[0].mxu0
    %v585 = vadd.f32 0.0, %v584
    %v586 = vpop.f32.mrb[0].mxu0
    %587 = vmatprep.mubr.f32.mxu0 0.0
    %588 = vmatmul.mubr.f32.gmra.mrb[0].mxu0 %v442
    %v589 = vpop.f32.mrb[0].mxu0
    %v590 = vadd.f32 0.0, %v589
    %v591 = vpop.f32.mrb[0].mxu0
    %592 = vmatprep.mubr.f32.mxu0 0.0
    %593 = vmatmul.mubr.f32.gmra.mrb[0].mxu0 %v443
    %v594 = vpop.f32.mrb[0].mxu0
    %v595 = vadd.f32 0.0, %v594
    %v596 = vpop.f32.mrb[0].mxu0
    %597 = vmatprep.mubr.f32.mxu0 0.0
    %598 = vmatmul.mubr.f32.gmra.mrb[0].mxu0 %v444
    %v599 = vpop.f32.mrb[0].mxu0
    %v600 = vadd.f32 0.0, %v599
    %v601 = vpop.f32.mrb[0].mxu0
    %602 = vmatprep.mubr.f32.mxu0 0.0
    %603 = vmatmul.mubr.f32.gmra.mrb[0].mxu0 %v445
    %v604 = vpop.f32.mrb[0].mxu0
    %v605 = vadd.f32 0.0, %v604
    %v606 = vpop.f32.mrb[0].mxu0
    %607 = vdwg.mxu0
    %s608 = scalar_lea.vmem [#allocation7], 256
    %609 = vst [vmem:[%s608] sm:$0xff] %v530
    %610 = vst [vmem:[%s608 + $0x8] sm:$0xff] %v535
    %611 = vst [vmem:[%s608 + $0x10] sm:$0xff] %v540
    %612 = vst [vmem:[%s608 + $0x18] sm:$0xff] %v545
    %613 = vst [vmem:[%s608 + $0x20] sm:$0xff] %v550
    %614 = vst [vmem:[%s608 + $0x28] sm:$0xff] %v555
    %615 = vst [vmem:[%s608 + $0x30] sm:$0xff] %v560
    %616 = vst [vmem:[%s608 + $0x38] sm:$0xff] %v565
    %617 = vst [vmem:[%s608 + $0x40] sm:$0xff] %v570
    %618 = vst [vmem:[%s608 + $0x48] sm:$0xff] %v575
    %619 = vst [vmem:[%s608 + $0x50] sm:$0xff] %v580
    %620 = vst [vmem:[%s608 + $0x58] sm:$0xff] %v585
    %621 = vst [vmem:[%s608 + $0x60] sm:$0xff] %v590
    %622 = vst [vmem:[%s608 + $0x68] sm:$0xff] %v595
    %623 = vst [vmem:[%s608 + $0x70] sm:$0xff] %v600
    %624 = vst [vmem:[%s608 + $0x78] sm:$0xff] %v605
    %s625 = scalar_lea.vmem [#allocation2], 384
    %v626 = vld [vmem:[%s625] sm:$0xff]
    %v627 = vld [vmem:[%s625 + $0x8] sm:$0xff]
    %v628 = vld [vmem:[%s625 + $0x10] sm:$0xff]
    %v629 = vld [vmem:[%s625 + $0x18] sm:$0xff]
    %v630 = vld [vmem:[%s625 + $0x20] sm:$0xff]
    %v631 = vld [vmem:[%s625 + $0x28] sm:$0xff]
    %v632 = vld [vmem:[%s625 + $0x30] sm:$0xff]
    %v633 = vld [vmem:[%s625 + $0x38] sm:$0xff]
    %v634 = vld [vmem:[%s625 + $0x40] sm:$0xff]
    %v635 = vld [vmem:[%s625 + $0x48] sm:$0xff]
    %v636 = vld [vmem:[%s625 + $0x50] sm:$0xff]
    %v637 = vld [vmem:[%s625 + $0x58] sm:$0xff]
    %v638 = vld [vmem:[%s625 + $0x60] sm:$0xff]
    %v639 = vld [vmem:[%s625 + $0x68] sm:$0xff]
    %v640 = vld [vmem:[%s625 + $0x70] sm:$0xff]
    %v641 = vld [vmem:[%s625 + $0x78] sm:$0xff]
    %s642 = scalar_lea.vmem [#allocation5], 384
    %v643 = vld [vmem:[%s642] sm:$0xff]
    %v644 = vld [vmem:[%s642 + $0x8] sm:$0xff]
    %v645 = vld [vmem:[%s642 + $0x10] sm:$0xff]
    %v646 = vld [vmem:[%s642 + $0x18] sm:$0xff]
    %v647 = vld [vmem:[%s642 + $0x20] sm:$0xff]
    %v648 = vld [vmem:[%s642 + $0x28] sm:$0xff]
    %v649 = vld [vmem:[%s642 + $0x30] sm:$0xff]
    %v650 = vld [vmem:[%s642 + $0x38] sm:$0xff]
    %v651 = vld [vmem:[%s642 + $0x40] sm:$0xff]
    %v652 = vld [vmem:[%s642 + $0x48] sm:$0xff]
    %v653 = vld [vmem:[%s642 + $0x50] sm:$0xff]
    %v654 = vld [vmem:[%s642 + $0x58] sm:$0xff]
    %v655 = vld [vmem:[%s642 + $0x60] sm:$0xff]
    %v656 = vld [vmem:[%s642 + $0x68] sm:$0xff]
    %v657 = vld [vmem:[%s642 + $0x70] sm:$0xff]
    %v658 = vld [vmem:[%s642 + $0x78] sm:$0xff]
    %659 = vmatprep.subr.mxu0 0.0
    %660 = vmatpush1.msra.mxu0 %v643
    %661 = vmatprep.subr.mxu0 0.0
    %662 = vmatpush1.msra.mxu0 %v644
    %663 = vmatprep.subr.mxu0 0.0
    %664 = vmatpush1.msra.mxu0 %v645
    %665 = vmatprep.subr.mxu0 0.0
    %666 = vmatpush1.msra.mxu0 %v646
    %667 = vmatprep.subr.mxu0 0.0
    %668 = vmatpush1.msra.mxu0 %v647
    %669 = vmatprep.subr.mxu0 0.0
    %670 = vmatpush1.msra.mxu0 %v648
    %671 = vmatprep.subr.mxu0 0.0
    %672 = vmatpush1.msra.mxu0 %v649
    %673 = vmatprep.subr.mxu0 0.0
    %674 = vmatpush1.msra.mxu0 %v650
    %675 = vmatprep.subr.mxu0 0.0
    %676 = vmatpush1.msra.mxu0 %v651
    %677 = vmatprep.subr.mxu0 0.0
    %678 = vmatpush1.msra.mxu0 %v652
    %679 = vmatprep.subr.mxu0 0.0
    %680 = vmatpush1.msra.mxu0 %v653
    %681 = vmatprep.subr.mxu0 0.0
    %682 = vmatpush1.msra.mxu0 %v654
    %683 = vmatprep.subr.mxu0 0.0
    %684 = vmatpush1.msra.mxu0 %v655
    %685 = vmatprep.subr.mxu0 0.0
    %686 = vmatpush1.msra.mxu0 %v656
    %687 = vmatprep.subr.mxu0 0.0
    %688 = vmatpush1.msra.mxu0 %v657
    %689 = vmatprep.subr.mxu0 0.0
    %690 = vmatpush1.msra.mxu0 %v658
    %691 = vmatprep.subr.mxu0 0.0
    %692 = vmatpush1.msra.mxu0 0.0
    %693 = vmatprep.subr.mxu0 0.0
    %694 = vmatpush1.msra.mxu0 0.0
    %695 = vmatprep.subr.mxu0 0.0
    %696 = vmatpush1.msra.mxu0 0.0
    %697 = vmatprep.subr.mxu0 0.0
    %698 = vmatpush1.msra.mxu0 0.0
    %699 = vmatprep.subr.mxu0 0.0
    %700 = vmatpush1.msra.mxu0 0.0
    %701 = vmatprep.subr.mxu0 0.0
    %702 = vmatpush1.msra.mxu0 0.0
    %703 = vmatprep.subr.mxu0 0.0
    %704 = vmatpush1.msra.mxu0 0.0
    %705 = vmatprep.subr.mxu0 0.0
    %706 = vmatpush1.msra.mxu0 0.0
    %707 = vmatprep.subr.mxu0 0.0
    %708 = vmatpush1.msra.mxu0 0.0
    %709 = vmatprep.subr.mxu0 0.0
    %710 = vmatpush1.msra.mxu0 0.0
    %711 = vmatprep.subr.mxu0 0.0
    %712 = vmatpush1.msra.mxu0 0.0
    %713 = vmatprep.subr.mxu0 0.0
    %714 = vmatpush1.msra.mxu0 0.0
    %715 = vmatprep.subr.mxu0 0.0
    %716 = vmatpush1.msra.mxu0 0.0
    %717 = vmatprep.subr.mxu0 0.0
    %718 = vmatpush1.msra.mxu0 0.0
    %719 = vmatprep.subr.mxu0 0.0
    %720 = vmatpush1.msra.mxu0 0.0
    %721 = vmatprep.subr.mxu0 0.0
    %722 = vmatpush1.msra.mxu0 0.0
    %723 = vmatprep.mubr.f32.mxu0 0.0
    %724 = vmatmul.mubr.f32.gmra.mrb[0].mxu0 %v626
    %v725 = vpop.f32.mrb[0].mxu0
    %v726 = vadd.f32 0.0, %v725
    %v727 = vpop.f32.mrb[0].mxu0
    %728 = vmatprep.mubr.f32.mxu0 0.0
    %729 = vmatmul.mubr.f32.gmra.mrb[0].mxu0 %v627
    %v730 = vpop.f32.mrb[0].mxu0
    %v731 = vadd.f32 0.0, %v730
    %v732 = vpop.f32.mrb[0].mxu0
    %733 = vmatprep.mubr.f32.mxu0 0.0
    %734 = vmatmul.mubr.f32.gmra.mrb[0].mxu0 %v628
    %v735 = vpop.f32.mrb[0].mxu0
    %v736 = vadd.f32 0.0, %v735
    %v737 = vpop.f32.mrb[0].mxu0
    %738 = vmatprep.mubr.f32.mxu0 0.0
    %739 = vmatmul.mubr.f32.gmra.mrb[0].mxu0 %v629
    %v740 = vpop.f32.mrb[0].mxu0
    %v741 = vadd.f32 0.0, %v740
    %v742 = vpop.f32.mrb[0].mxu0
    %743 = vmatprep.mubr.f32.mxu0 0.0
    %744 = vmatmul.mubr.f32.gmra.mrb[0].mxu0 %v630
    %v745 = vpop.f32.mrb[0].mxu0
    %v746 = vadd.f32 0.0, %v745
    %v747 = vpop.f32.mrb[0].mxu0
    %748 = vmatprep.mubr.f32.mxu0 0.0
    %749 = vmatmul.mubr.f32.gmra.mrb[0].mxu0 %v631
    %v750 = vpop.f32.mrb[0].mxu0
    %v751 = vadd.f32 0.0, %v750
    %v752 = vpop.f32.mrb[0].mxu0
    %753 = vmatprep.mubr.f32.mxu0 0.0
    %754 = vmatmul.mubr.f32.gmra.mrb[0].mxu0 %v632
    %v755 = vpop.f32.mrb[0].mxu0
    %v756 = vadd.f32 0.0, %v755
    %v757 = vpop.f32.mrb[0].mxu0
    %758 = vmatprep.mubr.f32.mxu0 0.0
    %759 = vmatmul.mubr.f32.gmra.mrb[0].mxu0 %v633
    %v760 = vpop.f32.mrb[0].mxu0
    %v761 = vadd.f32 0.0, %v760
    %v762 = vpop.f32.mrb[0].mxu0
    %763 = vmatprep.mubr.f32.mxu0 0.0
    %764 = vmatmul.mubr.f32.gmra.mrb[0].mxu0 %v634
    %v765 = vpop.f32.mrb[0].mxu0
    %v766 = vadd.f32 0.0, %v765
    %v767 = vpop.f32.mrb[0].mxu0
    %768 = vmatprep.mubr.f32.mxu0 0.0
    %769 = vmatmul.mubr.f32.gmra.mrb[0].mxu0 %v635
    %v770 = vpop.f32.mrb[0].mxu0
    %v771 = vadd.f32 0.0, %v770
    %v772 = vpop.f32.mrb[0].mxu0
    %773 = vmatprep.mubr.f32.mxu0 0.0
    %774 = vmatmul.mubr.f32.gmra.mrb[0].mxu0 %v636
    %v775 = vpop.f32.mrb[0].mxu0
    %v776 = vadd.f32 0.0, %v775
    %v777 = vpop.f32.mrb[0].mxu0
    %778 = vmatprep.mubr.f32.mxu0 0.0
    %779 = vmatmul.mubr.f32.gmra.mrb[0].mxu0 %v637
    %v780 = vpop.f32.mrb[0].mxu0
    %v781 = vadd.f32 0.0, %v780
    %v782 = vpop.f32.mrb[0].mxu0
    %783 = vmatprep.mubr.f32.mxu0 0.0
    %784 = vmatmul.mubr.f32.gmra.mrb[0].mxu0 %v638
    %v785 = vpop.f32.mrb[0].mxu0
    %v786 = vadd.f32 0.0, %v785
    %v787 = vpop.f32.mrb[0].mxu0
    %788 = vmatprep.mubr.f32.mxu0 0.0
    %789 = vmatmul.mubr.f32.gmra.mrb[0].mxu0 %v639
    %v790 = vpop.f32.mrb[0].mxu0
    %v791 = vadd.f32 0.0, %v790
    %v792 = vpop.f32.mrb[0].mxu0
    %793 = vmatprep.mubr.f32.mxu0 0.0
    %794 = vmatmul.mubr.f32.gmra.mrb[0].mxu0 %v640
    %v795 = vpop.f32.mrb[0].mxu0
    %v796 = vadd.f32 0.0, %v795
    %v797 = vpop.f32.mrb[0].mxu0
    %798 = vmatprep.mubr.f32.mxu0 0.0
    %799 = vmatmul.mubr.f32.gmra.mrb[0].mxu0 %v641
    %v800 = vpop.f32.mrb[0].mxu0
    %v801 = vadd.f32 0.0, %v800
    %v802 = vpop.f32.mrb[0].mxu0
    %803 = vdwg.mxu0
    %s804 = scalar_lea.vmem [#allocation7], 384
    %805 = vst [vmem:[%s804] sm:$0xff] %v726
    %806 = vst [vmem:[%s804 + $0x8] sm:$0xff] %v731
    %807 = vst [vmem:[%s804 + $0x10] sm:$0xff] %v736
    %808 = vst [vmem:[%s804 + $0x18] sm:$0xff] %v741
    %809 = vst [vmem:[%s804 + $0x20] sm:$0xff] %v746
    %810 = vst [vmem:[%s804 + $0x28] sm:$0xff] %v751
    %811 = vst [vmem:[%s804 + $0x30] sm:$0xff] %v756
    %812 = vst [vmem:[%s804 + $0x38] sm:$0xff] %v761
    %813 = vst [vmem:[%s804 + $0x40] sm:$0xff] %v766
    %814 = vst [vmem:[%s804 + $0x48] sm:$0xff] %v771
    %815 = vst [vmem:[%s804 + $0x50] sm:$0xff] %v776
    %816 = vst [vmem:[%s804 + $0x58] sm:$0xff] %v781
    %817 = vst [vmem:[%s804 + $0x60] sm:$0xff] %v786
    %818 = vst [vmem:[%s804 + $0x68] sm:$0xff] %v791
    %819 = vst [vmem:[%s804 + $0x70] sm:$0xff] %v796
    %820 = vst [vmem:[%s804 + $0x78] sm:$0xff] %v801
    // Predicated region
    $region18: #{tpu_custom_call.1} parent=1 // pred_check
      _
    $region19: #{tpu_custom_call.1} parent=1 // pred_check_branch
      %822 = sbr.rel (0) target = $region21
    $region20: #{tpu_custom_call.1} parent=1 // pred_region
      %s824 = ssub.s32 8192, 8192
      %825 = vsyncadd [#allocation4], %s824
      %s826 = sshll.u32 [#allocation7], 4
      %s827 = int_to_ptr.vmem [resolvable:$true] %s826
      %832 = dma.vmem_to_hbm [thread:$0]  %s827, 8192, %s2, [#allocation4], 128, 128, 8
    $region21: #{tpu_custom_call.1} parent=1 // pred_fallthru
      _
    // Predicated region
    $region22: #{tpu_custom_call.1} parent=1 // pred_check
      _
    $region23: #{tpu_custom_call.1} parent=1 // pred_check_branch
      %834 = sbr.rel (0) target = $region25
    $region24: #{tpu_custom_call.1} parent=1 // pred_region
      %835 = dma.done [#allocation4], 8192
    $region25: #{tpu_custom_call.1} parent=1 // pred_fallthru
      _
    %836 = vsyncpa [#allocation3], 1
    %837 = vsyncpa [#allocation6], 1
    %838 = vsyncpa [#allocation4], 1

</llo_original>
